<compile_context>
chip_gen: v7x
topology: tpu7x:2x2x1
jax: 0.10.0
libtpu: 0.0.40
codegen_flags: <defaults>
</compile_context>

<pallas_src>
import functools

import jax
import jax.numpy as jnp
from jax import lax
from jax.experimental import pallas as pl
from jax.experimental.pallas import tpu as pltpu


def _c_cosine_kernel(pred_ref, target_ref, mask_ref,
                     out_a_ref, out_b_ref,
                     acc_a_ref, acc_b_ref,
                     *, tiles_per_split, rows_total, needs_row_mask):
    i = pl.program_id(2)
    C = pred_ref.shape[1]
    Cm = mask_ref.shape[1]
    rpb = pred_ref.shape[2]
    acc_rows = acc_a_ref.shape[0]

    @pl.when(i == 0)
    def _init():
        acc_a_ref[...] = jnp.zeros_like(acc_a_ref)
        acc_b_ref[...] = jnp.zeros_like(acc_b_ref)

    # Channel-looped loads: avoid materializing full (C, rpb, 128) f32 copies;
    # pt/pp/tt live as three (rpb, 128) f32 accumulators (VPU adds, channel is
    # a non-layout axis).
    pt = pp = tt = None
    for c in range(C):
        p_c = pred_ref[0, c].astype(jnp.float32)     # (rpb, 128)
        t_c = target_ref[0, c].astype(jnp.float32)
        if c == 0:
            pt, pp, tt = p_c * t_c, p_c * p_c, t_c * t_c
        else:
            pt += p_c * t_c
            pp += p_c * p_c
            tt += t_c * t_c

    # cos(a*p, a*t) == cos(p, t) for a != 0 and == 0 for a == 0 (1e-12 clamp),
    # so compute one cosine per pixel and gate it by the argmax indicators.
    # rsqrt(max(x, 1e-24)) == 1 / max(sqrt(x), 1e-12) -> exact F.normalize clamp.
    cos = (pt * lax.rsqrt(jnp.maximum(pp, 1e-24))
              * lax.rsqrt(jnp.maximum(tt, 1e-24)))          # (rpb, 128)

    # torch.argmax(mask, 1) indicators (first-max tie-break), compared on the
    # native mask dtype (no cast).
    if Cm == 1:
        cos_a = cos                      # total == p-branch (argmax == 0 always)
        cos_b = jnp.zeros_like(cos)      # n-branch empty
    elif Cm == 2:
        # Accumulate total + n-branch only; p = total - n in the wrapper.
        is0 = mask_ref[0, 0] >= mask_ref[0, 1]               # argmax == 0
        cos_a = cos
        cos_b = jnp.where(is0, 0.0, cos)
    else:
        # Cm > 2: for argmax k >= 2 both scale factors |1-k| and k are nonzero,
        # so both branches keep the cosine -> accumulate p and n separately.
        # TODO(synk): reference clamps the *scaled* norms at 1e-12 for k >= 2;
        # this only differs for norms within ~|k| of 1e-12 (negligible).
        m0 = mask_ref[0, 0]
        mx = m0
        for c in range(1, Cm):
            mx = jnp.maximum(mx, mask_ref[0, c])
        is0 = m0 == mx
        is1 = jnp.logical_and(mask_ref[0, 1] == mx, jnp.logical_not(is0))
        cos_a = jnp.where(is1, 0.0, cos)   # p-branch (zero iff argmax == 1)
        cos_b = jnp.where(is0, 0.0, cos)   # n-branch (zero iff argmax == 0)

    if needs_row_mask:
        # Ragged last tile / phantom core-split tile: gate with a select (never
        # a multiply) so garbage in the OOB region can't reach the accumulators.
        t_logical = pl.program_id(1) * tiles_per_split + i
        row = t_logical * rpb + lax.broadcasted_iota(jnp.int32, cos.shape, 0)
        valid = row < rows_total
        cos_a = jnp.where(valid, cos_a, 0.0)
        cos_b = jnp.where(valid, cos_b, 0.0)

    # Deferred reduction: fold rows into small (acc_rows, 128) accumulators via
    # a tile-aligned reshape; the cross-lane reduce happens once at finalize.
    if rpb == acc_rows:
        acc_a_ref[...] += cos_a
        acc_b_ref[...] += cos_b
    else:
        acc_a_ref[...] += cos_a.reshape(rpb // acc_rows, acc_rows, 128).sum(axis=0)
        acc_b_ref[...] += cos_b.reshape(rpb // acc_rows, acc_rows, 128).sum(axis=0)

    @pl.when(i == pl.num_programs(2) - 1)
    def _finalize():
        out_a_ref[...] = jnp.sum(acc_a_ref[...]).reshape(1, 1, 1, 1)
        out_b_ref[...] = jnp.sum(acc_b_ref[...]).reshape(1, 1, 1, 1)


def _pick_block_rows(C, Cm, item, mask_item, rows_total,
                     max_block_rows, vmem_budget_bytes):
    """Budget-derived rows-per-block (multiple of 8, clamped to [8, 1024])."""
    # VMEM per row of 128 lanes: double-buffered input blocks + ~6 f32 temps.
    bytes_per_row = (2 * C * item + Cm * mask_item) * 128 * 2 + 6 * 128 * 4
    rpb = int(vmem_budget_bytes // bytes_per_row)
    rpb = max(8, min(rpb, 1024))
    if max_block_rows is not None:
        rpb = min(rpb, int(max_block_rows))
    rpb = max(8, rpb - rpb % 8)
    if rpb >= rows_total:
        return rows_total
    # Prefer an evenly dividing tile (drops per-tile row masking) as long as it
    # keeps at least half of the DMA-size budget.
    for cand in range(rpb, max(8, rpb // 2) - 1, -8):
        if rows_total % cand == 0:
            return cand
    return rpb


def c_cosine_similarity_loss(pred, target, mask, *, loss_weight=1.0,
                             balance_weight=0.4, max_block_rows=None,
                             vmem_budget_bytes=10 * 1024 * 1024):
    """pred/target: (N, C, H, W); mask: (N, Cm, H, W) logits. Any float dtype."""
    N, C, H, W = pred.shape
    Cm = mask.shape[1]
    HW = H * W
    P = N * HW   # divisor of the reference mean (padded pixels contribute 0)

    # Free metadata-only reshapes: NCHW -> (N, C, HW).
    pred3 = pred.reshape(N, C, HW)
    target3 = target.reshape(N, C, HW)
    mask3 = mask.reshape(N, Cm, HW)

    hw_pad = pl.cdiv(HW, 128) * 128
    if hw_pad != HW:
        # TODO(synk): rare ragged-HW fallback costs one extra HBM pass (pad);
        # padded pixels are all-zero -> cos == 0 -> contribute 0 to both sums.
        padw = [(0, 0), (0, 0), (0, hw_pad - HW)]
        pred3 = jnp.pad(pred3, padw)
        target3 = jnp.pad(target3, padw)
        mask3 = jnp.pad(mask3, padw)
    rows_total = hw_pad // 128

    # Split HW -> (rows, 128): still a free reshape (contiguous last dim).
    pred4 = pred3.reshape(N, C, rows_total, 128)
    target4 = target3.reshape(N, C, rows_total, 128)
    mask4 = mask3.reshape(N, Cm, rows_total, 128)

    rpb = _pick_block_rows(C, Cm, pred.dtype.itemsize, mask.dtype.itemsize,
                           rows_total, max_block_rows, vmem_budget_bytes)
    num_tiles = pl.cdiv(rows_total, rpb)

    # 2-way split of the pixel-tile axis so v7x's two TensorCores are both busy
    # even when N == 1 (no-op on single-TC chips). Skip when it would add a
    # large phantom-tile fraction to the sequential loop.
    split = 2 if (num_tiles >= 2 and (num_tiles % 2 == 0 or num_tiles >= 8)) else 1
    tiles_per_split = pl.cdiv(num_tiles, split)
    needs_row_mask = (split * tiles_per_split * rpb) != rows_total
    acc_rows = 8 if rpb % 8 == 0 else rpb
    last_tile = num_tiles - 1

    def data_map(n, s, i):
        # Clamp phantom core-split tiles onto the last real tile; their rows
        # are select-masked to zero inside the kernel.
        return (n, 0, jnp.minimum(s * tiles_per_split + i, last_tile), 0)

    kernel = functools.partial(
        _c_cosine_kernel,
        tiles_per_split=tiles_per_split,
        rows_total=rows_total,
        needs_row_mask=needs_row_mask,
    )

    out_a, out_b = pl.pallas_call(
        kernel,
        out_shape=(jax.ShapeDtypeStruct((N, split, 1, 1), jnp.float32),
                   jax.ShapeDtypeStruct((N, split, 1, 1), jnp.float32)),
        grid_spec=pltpu.PrefetchScalarGridSpec(
            num_scalar_prefetch=0,
            grid=(N, split, tiles_per_split),
            in_specs=[
                pl.BlockSpec((1, C, rpb, 128), data_map),
                pl.BlockSpec((1, C, rpb, 128), data_map),
                pl.BlockSpec((1, Cm, rpb, 128), data_map),
            ],
            out_specs=[
                pl.BlockSpec((1, 1, 1, 1), lambda n, s, i: (n, s, 0, 0)),
                pl.BlockSpec((1, 1, 1, 1), lambda n, s, i: (n, s, 0, 0)),
            ],
            scratch_shapes=[pltpu.VMEM((acc_rows, 128), jnp.float32),
                            pltpu.VMEM((acc_rows, 128), jnp.float32)],
        ),
        compiler_params=pltpu.CompilerParams(
            # Batch + core-split axes "parallel" (v7x megacore); pixel-tile axis
            # carries the accumulator -> "arbitrary".
            dimension_semantics=("parallel", "parallel", "arbitrary"),
            vmem_limit_bytes=32 * 1024 * 1024),
    )(pred4, target4, mask4)

    # Tiny finalize arithmetic on per-(batch, split) partial sums.
    sum_a = jnp.sum(out_a)          # Cm <= 2: total cosine sum ; Cm > 2: p-branch
    sum_b = jnp.sum(out_b)          # n-branch
    sum_p = (sum_a - sum_b) if Cm <= 2 else sum_a
    sum_n = sum_b
    loss_p = 1.0 - sum_p / P
    loss_n = 1.0 - sum_n / P
    return loss_weight * (balance_weight * loss_p
                          - (1.0 - balance_weight) * loss_n)


def _reference_loss(pred, target, mask, loss_weight=1.0, balance_weight=0.4):
    m = jnp.argmax(mask, axis=1)[:, None, :, :].astype(jnp.float32)

    def cosine_loss(p, t):
        pn = p / jnp.maximum(
            jnp.sqrt(jnp.sum(p * p, axis=1, keepdims=True)), 1e-12)
        tn = t / jnp.maximum(
            jnp.sqrt(jnp.sum(t * t, axis=1, keepdims=True)), 1e-12)
        cs = jnp.sum(pn * tn, axis=1)
        return 1.0 - jnp.mean(cs)

    lp = cosine_loss((1.0 - m) * pred, (1.0 - m) * target)
    ln = cosine_loss(m * pred, m * target)
    return loss_weight * (balance_weight * lp - (1.0 - balance_weight) * ln)


if __name__ == "__main__":
    def check(N, C, H, W, Cm, key, **kw):
        k1, k2, k3 = jax.random.split(key, 3)
        pred = jax.random.normal(k1, (N, C, H, W), dtype=jnp.float32)
        target = jax.random.normal(k2, (N, C, H, W), dtype=jnp.float32)
        mask = jax.random.normal(k3, (N, Cm, H, W), dtype=jnp.float32)
        loss_fn = jax.jit(functools.partial(c_cosine_similarity_loss, **kw))
        loss = jax.block_until_ready(loss_fn(pred, target, mask))
        ref = jax.block_until_ready(_reference_loss(pred, target, mask))
        assert jnp.abs(loss - ref) < 5e-3, (loss, ref)

    k0, k1, k2 = jax.random.split(jax.random.PRNGKey(0), 3)
    # Main case: segmentation-style features + binary change-detection mask.
    check(2, 4, 16, 16, 2, k0)
    # Multi-tile case: 2-way core-split axis + (8,128) reshape-accumulate path.
    check(1, 3, 64, 64, 2, k1, max_block_rows=16)
    # Cm > 2 argmax path + ragged last row-tile (select mask) path.
    check(1, 4, 48, 48, 3, k2, max_block_rows=16)
    print("KERNEL_OK")
</pallas_src>

<mosaic_0001>
module attributes {stable_mosaic.version = 11 : i64} {
  func.func @_c_cosine_kernel(%arg0: i32, %arg1: i32, %arg2: i32, %arg3: memref<1x4x2x128xf32, #tpu.memory_space<vmem>>, %arg4: memref<1x4x2x128xf32, #tpu.memory_space<vmem>>, %arg5: memref<1x2x2x128xf32, #tpu.memory_space<vmem>>, %arg6: memref<1x1x1x1xf32, #tpu.memory_space<vmem>>, %arg7: memref<1x1x1x1xf32, #tpu.memory_space<vmem>>, %arg8: memref<2x128xf32, #tpu.memory_space<vmem>>, %arg9: memref<2x128xf32, #tpu.memory_space<vmem>>) attributes {dimension_semantics = [#tpu.dimension_semantics<parallel>, #tpu.dimension_semantics<parallel>, #tpu.dimension_semantics<arbitrary>], iteration_bounds = array<i64: 2, 1, 1>, scalar_prefetch = 0 : i64, scratch_operands = 2 : i64, tpu.core_type = #tpu.core_type<tc>, window_params = [{transform_indices = @transform_0, window_bounds = array<i64: 1, 4, 2, 128>}, {transform_indices = @transform_1, window_bounds = array<i64: 1, 4, 2, 128>}, {transform_indices = @transform_2, window_bounds = array<i64: 1, 2, 2, 128>}, {transform_indices = @transform_3, window_bounds = array<i64: 1, 1, 1, 1>}, {transform_indices = @transform_4, window_bounds = array<i64: 1, 1, 1, 1>}]} {
    %c0_i32 = arith.constant 0 : i32
    %0 = arith.cmpi eq, %arg2, %c0_i32 : i32
    %1 = arith.extui %0 : i1 to i32
    %c0_i32_0 = arith.constant 0 : i32
    %2 = arith.cmpi ne, %1, %c0_i32_0 : i32
    scf.if %2 {
      %cst_49 = arith.constant 0.000000e+00 : f32
      %64 = vector.broadcast %cst_49 : f32 to vector<2x128xf32>
      %c0_50 = arith.constant 0 : index
      %c0_51 = arith.constant 0 : index
      %65 = vector.load %arg8[%c0_50, %c0_51] : memref<2x128xf32, #tpu.memory_space<vmem>>, vector<2x128xf32>
      tpu.vector_store %arg8[%c0_50, %c0_51], %64 {strides = array<i32>} : memref<2x128xf32, #tpu.memory_space<vmem>>, vector<2x128xf32>,
      %cst_52 = arith.constant 0.000000e+00 : f32
      %66 = vector.broadcast %cst_52 : f32 to vector<2x128xf32>
      %c0_53 = arith.constant 0 : index
      %c0_54 = arith.constant 0 : index
      %67 = vector.load %arg9[%c0_53, %c0_54] : memref<2x128xf32, #tpu.memory_space<vmem>>, vector<2x128xf32>
      tpu.vector_store %arg9[%c0_53, %c0_54], %66 {strides = array<i32>} : memref<2x128xf32, #tpu.memory_space<vmem>>, vector<2x128xf32>,
    } else {
    }
    %c0 = arith.constant 0 : index
    %c0_1 = arith.constant 0 : index
    %c0_2 = arith.constant 0 : index
    %c0_3 = arith.constant 0 : index
    %3 = vector.load %arg3[%c0, %c0_1, %c0_2, %c0_3] : memref<1x4x2x128xf32, #tpu.memory_space<vmem>>, vector<1x1x2x128xf32>
    %4 = vector.shape_cast %3 : vector<1x1x2x128xf32> to vector<2x128xf32>
    %c0_4 = arith.constant 0 : index
    %c0_5 = arith.constant 0 : index
    %c0_6 = arith.constant 0 : index
    %c0_7 = arith.constant 0 : index
    %5 = vector.load %arg4[%c0_4, %c0_5, %c0_6, %c0_7] : memref<1x4x2x128xf32, #tpu.memory_space<vmem>>, vector<1x1x2x128xf32>
    %6 = vector.shape_cast %5 : vector<1x1x2x128xf32> to vector<2x128xf32>
    %7 = arith.mulf %4, %6 : vector<2x128xf32>
    %8 = arith.mulf %4, %4 : vector<2x128xf32>
    %9 = arith.mulf %6, %6 : vector<2x128xf32>
    %c0_8 = arith.constant 0 : index
    %c1 = arith.constant 1 : index
    %c0_9 = arith.constant 0 : index
    %c0_10 = arith.constant 0 : index
    %10 = vector.load %arg3[%c0_8, %c1, %c0_9, %c0_10] : memref<1x4x2x128xf32, #tpu.memory_space<vmem>>, vector<1x1x2x128xf32>
    %11 = vector.shape_cast %10 : vector<1x1x2x128xf32> to vector<2x128xf32>
    %c0_11 = arith.constant 0 : index
    %c1_12 = arith.constant 1 : index
    %c0_13 = arith.constant 0 : index
    %c0_14 = arith.constant 0 : index
    %12 = vector.load %arg4[%c0_11, %c1_12, %c0_13, %c0_14] : memref<1x4x2x128xf32, #tpu.memory_space<vmem>>, vector<1x1x2x128xf32>
    %13 = vector.shape_cast %12 : vector<1x1x2x128xf32> to vector<2x128xf32>
    %14 = arith.mulf %11, %13 : vector<2x128xf32>
    %15 = arith.addf %7, %14 : vector<2x128xf32>
    %16 = arith.mulf %11, %11 : vector<2x128xf32>
    %17 = arith.addf %8, %16 : vector<2x128xf32>
    %18 = arith.mulf %13, %13 : vector<2x128xf32>
    %19 = arith.addf %9, %18 : vector<2x128xf32>
    %c0_15 = arith.constant 0 : index
    %c2 = arith.constant 2 : index
    %c0_16 = arith.constant 0 : index
    %c0_17 = arith.constant 0 : index
    %20 = vector.load %arg3[%c0_15, %c2, %c0_16, %c0_17] : memref<1x4x2x128xf32, #tpu.memory_space<vmem>>, vector<1x1x2x128xf32>
    %21 = vector.shape_cast %20 : vector<1x1x2x128xf32> to vector<2x128xf32>
    %c0_18 = arith.constant 0 : index
    %c2_19 = arith.constant 2 : index
    %c0_20 = arith.constant 0 : index
    %c0_21 = arith.constant 0 : index
    %22 = vector.load %arg4[%c0_18, %c2_19, %c0_20, %c0_21] : memref<1x4x2x128xf32, #tpu.memory_space<vmem>>, vector<1x1x2x128xf32>
    %23 = vector.shape_cast %22 : vector<1x1x2x128xf32> to vector<2x128xf32>
    %24 = arith.mulf %21, %23 : vector<2x128xf32>
    %25 = arith.addf %15, %24 : vector<2x128xf32>
    %26 = arith.mulf %21, %21 : vector<2x128xf32>
    %27 = arith.addf %17, %26 : vector<2x128xf32>
    %28 = arith.mulf %23, %23 : vector<2x128xf32>
    %29 = arith.addf %19, %28 : vector<2x128xf32>
    %c0_22 = arith.constant 0 : index
    %c3 = arith.constant 3 : index
    %c0_23 = arith.constant 0 : index
    %c0_24 = arith.constant 0 : index
    %30 = vector.load %arg3[%c0_22, %c3, %c0_23, %c0_24] : memref<1x4x2x128xf32, #tpu.memory_space<vmem>>, vector<1x1x2x128xf32>
    %31 = vector.shape_cast %30 : vector<1x1x2x128xf32> to vector<2x128xf32>
    %c0_25 = arith.constant 0 : index
    %c3_26 = arith.constant 3 : index
    %c0_27 = arith.constant 0 : index
    %c0_28 = arith.constant 0 : index
    %32 = vector.load %arg4[%c0_25, %c3_26, %c0_27, %c0_28] : memref<1x4x2x128xf32, #tpu.memory_space<vmem>>, vector<1x1x2x128xf32>
    %33 = vector.shape_cast %32 : vector<1x1x2x128xf32> to vector<2x128xf32>
    %34 = arith.mulf %31, %33 : vector<2x128xf32>
    %35 = arith.addf %25, %34 : vector<2x128xf32>
    %36 = arith.mulf %31, %31 : vector<2x128xf32>
    %37 = arith.addf %27, %36 : vector<2x128xf32>
    %38 = arith.mulf %33, %33 : vector<2x128xf32>
    %39 = arith.addf %29, %38 : vector<2x128xf32>
    %cst = arith.constant 1.000000e-24 : f32
    %40 = vector.broadcast %cst : f32 to vector<2x128xf32>
    %41 = arith.maximumf %37, %40 : vector<2x128xf32>
    %42 = math.rsqrt %41 : vector<2x128xf32>
    %43 = arith.mulf %35, %42 : vector<2x128xf32>
    %cst_29 = arith.constant 1.000000e-24 : f32
    %44 = vector.broadcast %cst_29 : f32 to vector<2x128xf32>
    %45 = arith.maximumf %39, %44 : vector<2x128xf32>
    %46 = math.rsqrt %45 : vector<2x128xf32>
    %47 = arith.mulf %43, %46 : vector<2x128xf32>
    %c0_30 = arith.constant 0 : index
    %c0_31 = arith.constant 0 : index
    %c0_32 = arith.constant 0 : index
    %c0_33 = arith.constant 0 : index
    %48 = vector.load %arg5[%c0_30, %c0_31, %c0_32, %c0_33] : memref<1x2x2x128xf32, #tpu.memory_space<vmem>>, vector<1x1x2x128xf32>
    %49 = vector.shape_cast %48 : vector<1x1x2x128xf32> to vector<2x128xf32>
    %c0_34 = arith.constant 0 : index
    %c1_35 = arith.constant 1 : index
    %c0_36 = arith.constant 0 : index
    %c0_37 = arith.constant 0 : index
    %50 = vector.load %arg5[%c0_34, %c1_35, %c0_36, %c0_37] : memref<1x2x2x128xf32, #tpu.memory_space<vmem>>, vector<1x1x2x128xf32>
    %51 = vector.shape_cast %50 : vector<1x1x2x128xf32> to vector<2x128xf32>
    %52 = arith.cmpf oge, %49, %51 : vector<2x128xf32>
    %cst_38 = arith.constant 0.000000e+00 : f32
    %53 = vector.broadcast %cst_38 : f32 to vector<2x128xf32>
    %54 = arith.select %52, %53, %47 : vector<2x128xi1>, vector<2x128xf32>
    %c0_39 = arith.constant 0 : index
    %c0_40 = arith.constant 0 : index
    %55 = vector.load %arg8[%c0_39, %c0_40] : memref<2x128xf32, #tpu.memory_space<vmem>>, vector<2x128xf32>
    %56 = arith.addf %55, %47 : vector<2x128xf32>
    %c0_41 = arith.constant 0 : index
    %c0_42 = arith.constant 0 : index
    %57 = vector.load %arg8[%c0_41, %c0_42] : memref<2x128xf32, #tpu.memory_space<vmem>>, vector<2x128xf32>
    tpu.vector_store %arg8[%c0_41, %c0_42], %56 {strides = array<i32>} : memref<2x128xf32, #tpu.memory_space<vmem>>, vector<2x128xf32>,
    %c0_43 = arith.constant 0 : index
    %c0_44 = arith.constant 0 : index
    %58 = vector.load %arg9[%c0_43, %c0_44] : memref<2x128xf32, #tpu.memory_space<vmem>>, vector<2x128xf32>
    %59 = arith.addf %58, %54 : vector<2x128xf32>
    %c0_45 = arith.constant 0 : index
    %c0_46 = arith.constant 0 : index
    %60 = vector.load %arg9[%c0_45, %c0_46] : memref<2x128xf32, #tpu.memory_space<vmem>>, vector<2x128xf32>
    tpu.vector_store %arg9[%c0_45, %c0_46], %59 {strides = array<i32>} : memref<2x128xf32, #tpu.memory_space<vmem>>, vector<2x128xf32>,
    %c0_i32_47 = arith.constant 0 : i32
    %61 = arith.cmpi eq, %arg2, %c0_i32_47 : i32
    %62 = arith.extui %61 : i1 to i32
    %c0_i32_48 = arith.constant 0 : i32
    %63 = arith.cmpi ne, %62, %c0_i32_48 : i32
    scf.if %63 {
      %c0_49 = arith.constant 0 : index
      %c0_50 = arith.constant 0 : index
      %64 = vector.load %arg8[%c0_49, %c0_50] : memref<2x128xf32, #tpu.memory_space<vmem>>, vector<2x128xf32>
      %65 = vector.shape_cast %64 : vector<2x128xf32> to vector<1x2x128xf32>
      %cst_51 = arith.constant dense<0.000000e+00> : vector<1xf32>
      %66 = vector.multi_reduction <add>, %65, %cst_51 [1, 2] : vector<1x2x128xf32> to vector<1xf32>
      %67 = vector.shape_cast %66 : vector<1xf32> to vector<1x1x1xf32>
      %68 = vector.extract %67[0, 0, 0] : f32 from vector<1x1x1xf32>
      %69 = vector.broadcast %68 : f32 to vector<1x1x1x1xf32>
      %c0_52 = arith.constant 0 : index
      %c0_53 = arith.constant 0 : index
      %c0_54 = arith.constant 0 : index
      %c0_55 = arith.constant 0 : index
      %70 = vector.load %arg6[%c0_52, %c0_53, %c0_54, %c0_55] : memref<1x1x1x1xf32, #tpu.memory_space<vmem>>, vector<1x1x1x1xf32>
      tpu.vector_store %arg6[%c0_52, %c0_53, %c0_54, %c0_55], %69 {strides = array<i32>} : memref<1x1x1x1xf32, #tpu.memory_space<vmem>>, vector<1x1x1x1xf32>,
      %c0_56 = arith.constant 0 : index
      %c0_57 = arith.constant 0 : index
      %71 = vector.load %arg9[%c0_56, %c0_57] : memref<2x128xf32, #tpu.memory_space<vmem>>, vector<2x128xf32>
      %72 = vector.shape_cast %71 : vector<2x128xf32> to vector<1x2x128xf32>
      %cst_58 = arith.constant dense<0.000000e+00> : vector<1xf32>
      %73 = vector.multi_reduction <add>, %72, %cst_58 [1, 2] : vector<1x2x128xf32> to vector<1xf32>
      %74 = vector.shape_cast %73 : vector<1xf32> to vector<1x1x1xf32>
      %75 = vector.extract %74[0, 0, 0] : f32 from vector<1x1x1xf32>
      %76 = vector.broadcast %75 : f32 to vector<1x1x1x1xf32>
      %c0_59 = arith.constant 0 : index
      %c0_60 = arith.constant 0 : index
      %c0_61 = arith.constant 0 : index
      %c0_62 = arith.constant 0 : index
      %77 = vector.load %arg7[%c0_59, %c0_60, %c0_61, %c0_62] : memref<1x1x1x1xf32, #tpu.memory_space<vmem>>, vector<1x1x1x1xf32>
      tpu.vector_store %arg7[%c0_59, %c0_60, %c0_61, %c0_62], %76 {strides = array<i32>} : memref<1x1x1x1xf32, #tpu.memory_space<vmem>>, vector<1x1x1x1xf32>,
    } else {
    }
    return
  }
  func.func @transform_0(%arg0: i32, %arg1: i32, %arg2: i32) -> (i32, i32, i32, i32) {
    %c1_i32 = arith.constant 1 : i32
    %0 = arith.muli %arg1, %c1_i32 : i32
    %1 = arith.addi %0, %arg2 : i32
    %c0_i32 = arith.constant 0 : i32
    %2 = arith.minsi %1, %c0_i32 : i32
    %c0_i32_0 = arith.constant 0 : i32
    %c0_i32_1 = arith.constant 0 : i32
    %c0_i32_2 = arith.constant 0 : i32
    return %arg0, %c0_i32_0, %2, %c0_i32_1 : i32, i32, i32, i32
  }
  func.func @transform_1(%arg0: i32, %arg1: i32, %arg2: i32) -> (i32, i32, i32, i32) {
    %c1_i32 = arith.constant 1 : i32
    %0 = arith.muli %arg1, %c1_i32 : i32
    %1 = arith.addi %0, %arg2 : i32
    %c0_i32 = arith.constant 0 : i32
    %2 = arith.minsi %1, %c0_i32 : i32
    %c0_i32_0 = arith.constant 0 : i32
    %c0_i32_1 = arith.constant 0 : i32
    %c0_i32_2 = arith.constant 0 : i32
    return %arg0, %c0_i32_0, %2, %c0_i32_1 : i32, i32, i32, i32
  }
  func.func @transform_2(%arg0: i32, %arg1: i32, %arg2: i32) -> (i32, i32, i32, i32) {
    %c1_i32 = arith.constant 1 : i32
    %0 = arith.muli %arg1, %c1_i32 : i32
    %1 = arith.addi %0, %arg2 : i32
    %c0_i32 = arith.constant 0 : i32
    %2 = arith.minsi %1, %c0_i32 : i32
    %c0_i32_0 = arith.constant 0 : i32
    %c0_i32_1 = arith.constant 0 : i32
    %c0_i32_2 = arith.constant 0 : i32
    return %arg0, %c0_i32_0, %2, %c0_i32_1 : i32, i32, i32, i32
  }
  func.func @transform_3(%arg0: i32, %arg1: i32, %arg2: i32) -> (i32, i32, i32, i32) {
    %c0_i32 = arith.constant 0 : i32
    %c0_i32_0 = arith.constant 0 : i32
    %c0_i32_1 = arith.constant 0 : i32
    return %arg0, %arg1, %c0_i32, %c0_i32_0 : i32, i32, i32, i32
  }
  func.func @transform_4(%arg0: i32, %arg1: i32, %arg2: i32) -> (i32, i32, i32, i32) {
    %c0_i32 = arith.constant 0 : i32
    %c0_i32_0 = arith.constant 0 : i32
    %c0_i32_1 = arith.constant 0 : i32
    return %arg0, %arg1, %c0_i32, %c0_i32_0 : i32, i32, i32, i32
  }
}

</mosaic_0001>

<llo_original>
// kernel: c_cosine_similarity_loss.1
$region0: #{c_cosine_similarity_loss.1}
  #allocation0 [shape = 'u32[]', space=smem, size = 0x4, offset = 0x4, fixed_abs, tag = 'smem constant byte address 0x4 - core index']
  #allocation1 [shape = 'u32[144,128]{1,0:T(1,128)}', space=vmem, size = 0x12000, scoped, tag = 'internal scratch']
  #allocation2 [shape = 'f32[2,128]{1,0:T(2,128)}', space=vmem, size = 0x400, scoped, tag = 'scratch operand']
  #allocation3 [shape = 'f32[2,128]{1,0:T(2,128)}', space=vmem, size = 0x400, scoped, tag = 'scratch operand']
  %s0 = inlined_call_operand.vmem [shape: f32[2,4,2,128], index: 0, kind: input, shape index: {}]
  %s1 = inlined_call_operand.vmem [shape: f32[2,4,2,128], index: 1, kind: input, shape index: {}]
  %s2 = inlined_call_operand.vmem [shape: f32[2,2,2,128], index: 2, kind: input, shape index: {}]
  %s3 = inlined_call_operand.vmem [shape: f32[2,1,1,1], index: 3, kind: output, shape index: {0}]
  %s4 = inlined_call_operand.vmem [shape: f32[2,1,1,1], index: 4, kind: output, shape index: {1}]
  %5 = xla_tuple %s3, %s4
  %s6 = sld [smem:[#allocation0]]
  $region61: #{c_cosine_similarity_loss.1} parent=0
    _
  %s8 = ssub.s32 1, %s6
  %s9 = scalar_select 0, %s8, %s6
  loop: start=0, step=1, limit=4
  $region2: #{c_cosine_similarity_loss.1} parent=0 // loop_pre_header
    _
  $region3: #{c_cosine_similarity_loss.1} parent=0 // loop_header
    %s11 = sphi 0, %s15
    %p12 = scmp.ge.s32.totalorder %s11, 4
    %s18 = sphi 0, %s37
    %s19 = sphi 0, %s33
    %s20 = sphi 0, %s29
    %s21 = sphi 0, %s18
    %s22 = sphi 0, %s19
    %s23 = sphi 0, %s20
    %s24 = sphi 0, %s21
    %s25 = sphi 0, %s22
    %s26 = sphi 0, %s23
    %s48 = sphi 0, %s50
    %s51 = sphi 0, %s48
    %s52 = sphi 0, %s51
    %s68 = sphi 0, %s52
    %s82 = sphi 0, %s84
    %s85 = sphi 0, %s82
    %s86 = sphi 0, %s85
    %s102 = sphi 0, %s86
    %s116 = sphi 0, %s118
    %s119 = sphi 0, %s116
    %s120 = sphi 0, %s119
    %s136 = sphi 0, %s120
    %s144 = sphi 0, %s146
    %s147 = sphi 0, %s144
    %s148 = sphi 0, %s147
    %s164 = sphi 0, %s148
    %s172 = sphi 0, %s174
    %s175 = sphi 0, %s172
    %s176 = sphi 0, %s175
    %s192 = sphi 0, %s176
  $region4: #{c_cosine_similarity_loss.1} parent=0 // loop_header_branch
    %14 = sbr.rel (%p12) target = $region8
  $region5: #{c_cosine_similarity_loss.1} parent=0 // loop_body
    %s16 = ssub.s32 %s11, 1
    %s17 = ssub.s32 %s11, 2
    %s27 = sadd.s32 1, %s20
    %p28 = scmp.ge.s32.totalorder %s27, 1
    %s29 = scalar_select %p28, 0, %s27
    %s30 = sadd.s32 1, %s19
    %s31 = scalar_select %p28, %s30, %s19
    %p32 = scmp.ge.s32.totalorder %s31, 1
    %s33 = scalar_select %p32, 0, %s31
    %s34 = sadd.s32 1, %s18
    %s35 = scalar_select %p32, %s34, %s18
    %p36 = scmp.ge.s32.totalorder %s35, 2
    %s37 = scalar_select %p36, 0, %s35
    %s38 = sadd.s32 %s19, %s20
    %p39 = scmp.lt.s32.totalorder %s38, 0
    %s40 = scalar_select %p39, %s38, 0
    %s41 = sadd.s32 %s33, %s29
    %p42 = scmp.lt.s32.totalorder %s41, 0
    %s43 = scalar_select %p42, %s41, 0
    %s44 = ssub.s32 %s18, %s37
    %s45 = ssub.s32 %s40, %s43
    %s46 = sor.u32 %s44, %s45
    %p47 = scmp.eq.s32.totalorder %s46, 0
    %s49 = sadd.s32 %s48, 1
    %s50 = scalar_select %p47, %s48, %s49
    %p53 = pneg %p47
    %p54 = scmp.eq.s32.totalorder %s11, 1
    %p55 = por %p53, %p54
    %p56 = scmp.ne.s32.totalorder %s48, %s51
    %p57 = scmp.eq.s32.totalorder %s11, 0
    %p58 = por %p56, %p57
    %p59 = scmp.ne.s32.totalorder %s48, %s51
    %p60 = scmp.eq.s32.totalorder %s16, 1
    %p61 = por %p59, %p60
    %p62 = scmp.ne.s32.totalorder %s51, %s52
    %p63 = scmp.eq.s32.totalorder %s16, 0
    %p64 = por %p62, %p63
    %p65 = scmp.ne.s32.totalorder %s51, %s52
    %p66 = scmp.eq.s32.totalorder %s17, 1
    %p67 = por %p65, %p66
    %p69 = scmp.ne.s32.totalorder %s52, %s68
    %p70 = scmp.eq.s32.totalorder %s17, 0
    %p71 = por %p69, %p70
    %s72 = sadd.s32 %s19, %s20
    %p73 = scmp.lt.s32.totalorder %s72, 0
    %s74 = scalar_select %p73, %s72, 0
    %s75 = sadd.s32 %s33, %s29
    %p76 = scmp.lt.s32.totalorder %s75, 0
    %s77 = scalar_select %p76, %s75, 0
    %s78 = ssub.s32 %s18, %s37
    %s79 = ssub.s32 %s74, %s77
    %s80 = sor.u32 %s78, %s79
    %p81 = scmp.eq.s32.totalorder %s80, 0
    %s83 = sadd.s32 %s82, 1
    %s84 = scalar_select %p81, %s82, %s83
    %p87 = pneg %p81
    %p88 = scmp.eq.s32.totalorder %s11, 1
    %p89 = por %p87, %p88
    %p90 = scmp.ne.s32.totalorder %s82, %s85
    %p91 = scmp.eq.s32.totalorder %s11, 0
    %p92 = por %p90, %p91
    %p93 = scmp.ne.s32.totalorder %s82, %s85
    %p94 = scmp.eq.s32.totalorder %s16, 1
    %p95 = por %p93, %p94
    %p96 = scmp.ne.s32.totalorder %s85, %s86
    %p97 = scmp.eq.s32.totalorder %s16, 0
    %p98 = por %p96, %p97
    %p99 = scmp.ne.s32.totalorder %s85, %s86
    %p100 = scmp.eq.s32.totalorder %s17, 1
    %p101 = por %p99, %p100
    %p103 = scmp.ne.s32.totalorder %s86, %s102
    %p104 = scmp.eq.s32.totalorder %s17, 0
    %p105 = por %p103, %p104
    %s106 = sadd.s32 %s19, %s20
    %p107 = scmp.lt.s32.totalorder %s106, 0
    %s108 = scalar_select %p107, %s106, 0
    %s109 = sadd.s32 %s33, %s29
    %p110 = scmp.lt.s32.totalorder %s109, 0
    %s111 = scalar_select %p110, %s109, 0
    %s112 = ssub.s32 %s18, %s37
    %s113 = ssub.s32 %s108, %s111
    %s114 = sor.u32 %s112, %s113
    %p115 = scmp.eq.s32.totalorder %s114, 0
    %s117 = sadd.s32 %s116, 1
    %s118 = scalar_select %p115, %s116, %s117
    %p121 = pneg %p115
    %p122 = scmp.eq.s32.totalorder %s11, 1
    %p123 = por %p121, %p122
    %p124 = scmp.ne.s32.totalorder %s116, %s119
    %p125 = scmp.eq.s32.totalorder %s11, 0
    %p126 = por %p124, %p125
    %p127 = scmp.ne.s32.totalorder %s116, %s119
    %p128 = scmp.eq.s32.totalorder %s16, 1
    %p129 = por %p127, %p128
    %p130 = scmp.ne.s32.totalorder %s119, %s120
    %p131 = scmp.eq.s32.totalorder %s16, 0
    %p132 = por %p130, %p131
    %p133 = scmp.ne.s32.totalorder %s119, %s120
    %p134 = scmp.eq.s32.totalorder %s17, 1
    %p135 = por %p133, %p134
    %p137 = scmp.ne.s32.totalorder %s120, %s136
    %p138 = scmp.eq.s32.totalorder %s17, 0
    %p139 = por %p137, %p138
    %s140 = ssub.s32 %s18, %s37
    %s141 = ssub.s32 %s19, %s33
    %s142 = sor.u32 %s140, %s141
    %p143 = scmp.eq.s32.totalorder %s142, 0
    %s145 = sadd.s32 %s144, 1
    %s146 = scalar_select %p143, %s144, %s145
    %p149 = pneg %p143
    %p150 = scmp.eq.s32.totalorder %s11, 1
    %p151 = por %p149, %p150
    %p152 = scmp.ne.s32.totalorder %s144, %s147
    %p153 = scmp.eq.s32.totalorder %s11, 0
    %p154 = por %p152, %p153
    %p155 = scmp.ne.s32.totalorder %s144, %s147
    %p156 = scmp.eq.s32.totalorder %s16, 1
    %p157 = por %p155, %p156
    %p158 = scmp.ne.s32.totalorder %s147, %s148
    %p159 = scmp.eq.s32.totalorder %s16, 0
    %p160 = por %p158, %p159
    %p161 = scmp.ne.s32.totalorder %s147, %s148
    %p162 = scmp.eq.s32.totalorder %s17, 1
    %p163 = por %p161, %p162
    %p165 = scmp.ne.s32.totalorder %s148, %s164
    %p166 = scmp.eq.s32.totalorder %s17, 0
    %p167 = por %p165, %p166
    %s168 = ssub.s32 %s18, %s37
    %s169 = ssub.s32 %s19, %s33
    %s170 = sor.u32 %s168, %s169
    %p171 = scmp.eq.s32.totalorder %s170, 0
    %s173 = sadd.s32 %s172, 1
    %s174 = scalar_select %p171, %s172, %s173
    %p177 = pneg %p171
    %p178 = scmp.eq.s32.totalorder %s11, 1
    %p179 = por %p177, %p178
    %p180 = scmp.ne.s32.totalorder %s172, %s175
    %p181 = scmp.eq.s32.totalorder %s11, 0
    %p182 = por %p180, %p181
    %p183 = scmp.ne.s32.totalorder %s172, %s175
    %p184 = scmp.eq.s32.totalorder %s16, 1
    %p185 = por %p183, %p184
    %p186 = scmp.ne.s32.totalorder %s175, %s176
    %p187 = scmp.eq.s32.totalorder %s16, 0
    %p188 = por %p186, %p187
    %p189 = scmp.ne.s32.totalorder %s175, %s176
    %p190 = scmp.eq.s32.totalorder %s17, 1
    %p191 = por %p189, %p190
    %p193 = scmp.ne.s32.totalorder %s176, %s192
    %p194 = scmp.eq.s32.totalorder %s17, 0
    %p195 = por %p193, %p194
    %p196 = scmp.le.s32.totalorder 1, %s11
    %p197 = scmp.lt.s32.totalorder %s11, 3
    %p198 = pnand %p196, %p197
    %p199 = pneg %p198
    // Predicated region
    $region9: #{c_cosine_similarity_loss.1} parent=5 // pred_check
      _
    $region10: #{c_cosine_similarity_loss.1} parent=5 // pred_check_branch
      %201 = sbr.rel (%p198) target = $region12
    $region11: #{c_cosine_similarity_loss.1} parent=5 // pred_region
      %s202 = ssub.s32 %s11, 1
    $region12: #{c_cosine_similarity_loss.1} parent=5 // pred_fallthru
      _
    %p203 = scmp.lt.s32.totalorder %s11, 2
    // Predicated region
    $region13: #{c_cosine_similarity_loss.1} parent=5 // pred_check
      %p204 = pneg %p203
    $region14: #{c_cosine_similarity_loss.1} parent=5 // pred_check_branch
      %206 = sbr.rel (%p204) target = $region16
    $region15: #{c_cosine_similarity_loss.1} parent=5 // pred_region
      // Predicated region
      $region17: #{c_cosine_similarity_loss.1} parent=15 // pred_check
        %p207 = pneg %p58
      $region18: #{c_cosine_similarity_loss.1} parent=15 // pred_check_branch
        %209 = sbr.rel (%p207) target = $region20
      $region19: #{c_cosine_similarity_loss.1} parent=15 // pred_region
        %s210 = sadd.s32 %s19, %s20
        %p211 = scmp.lt.s32.totalorder %s210, 0
        %s212 = scalar_select %p211, %s210, 0
        %p213 = scmp.lt.s32.totalorder %s18, 1
        %s214 = scalar_select %p213, %s18, 1
        %p215 = scmp.lt.s32.totalorder %s212, 0
        %s216 = scalar_select %p215, %s212, 0
        %s217 = smul.addr %s214, 4
        %s218 = sadd.s32 %s216, %s217
        %s219 = smul.addr %s218, 2
        %s220 = scalar_lea.vmem %s0, %s219
        %s221 = sadd.s32 %s19, %s20
        %p222 = scmp.lt.s32.totalorder %s221, 0
        %s223 = scalar_select %p222, %s221, 0
      $region20: #{c_cosine_similarity_loss.1} parent=15 // pred_fallthru
        _
      // Predicated region
      $region21: #{c_cosine_similarity_loss.1} parent=15 // pred_check
        %p224 = pneg %p92
      $region22: #{c_cosine_similarity_loss.1} parent=15 // pred_check_branch
        %226 = sbr.rel (%p224) target = $region24
      $region23: #{c_cosine_similarity_loss.1} parent=15 // pred_region
        %s227 = sadd.s32 %s19, %s20
        %p228 = scmp.lt.s32.totalorder %s227, 0
        %s229 = scalar_select %p228, %s227, 0
        %p230 = scmp.lt.s32.totalorder %s18, 1
        %s231 = scalar_select %p230, %s18, 1
        %p232 = scmp.lt.s32.totalorder %s229, 0
        %s233 = scalar_select %p232, %s229, 0
        %s234 = smul.addr %s231, 4
        %s235 = sadd.s32 %s233, %s234
        %s236 = smul.addr %s235, 2
        %s237 = scalar_lea.vmem %s1, %s236
        %s238 = sadd.s32 %s19, %s20
        %p239 = scmp.lt.s32.totalorder %s238, 0
        %s240 = scalar_select %p239, %s238, 0
      $region24: #{c_cosine_similarity_loss.1} parent=15 // pred_fallthru
        _
      // Predicated region
      $region25: #{c_cosine_similarity_loss.1} parent=15 // pred_check
        %p241 = pneg %p126
      $region26: #{c_cosine_similarity_loss.1} parent=15 // pred_check_branch
        %243 = sbr.rel (%p241) target = $region28
      $region27: #{c_cosine_similarity_loss.1} parent=15 // pred_region
        %s244 = sadd.s32 %s19, %s20
        %p245 = scmp.lt.s32.totalorder %s244, 0
        %s246 = scalar_select %p245, %s244, 0
        %p247 = scmp.lt.s32.totalorder %s18, 1
        %s248 = scalar_select %p247, %s18, 1
        %p249 = scmp.lt.s32.totalorder %s246, 0
        %s250 = scalar_select %p249, %s246, 0
        %s251 = smul.addr %s248, 2
        %s252 = sadd.s32 %s250, %s251
        %s253 = smul.addr %s252, 2
        %s254 = scalar_lea.vmem %s2, %s253
        %s255 = sadd.s32 %s19, %s20
        %p256 = scmp.lt.s32.totalorder %s255, 0
        %s257 = scalar_select %p256, %s255, 0
      $region28: #{c_cosine_similarity_loss.1} parent=15 // pred_fallthru
        _
    $region16: #{c_cosine_similarity_loss.1} parent=5 // pred_fallthru
      _
    %p258 = scmp.le.s32.totalorder 1, %s11
    %p259 = scmp.lt.s32.totalorder %s11, 3
    %p260 = pnand %p258, %p259
    %p261 = pneg %p260
    // Predicated region
    $region29: #{c_cosine_similarity_loss.1} parent=5 // pred_check
      _
    $region30: #{c_cosine_similarity_loss.1} parent=5 // pred_check_branch
      %263 = sbr.rel (%p260) target = $region32
    $region31: #{c_cosine_similarity_loss.1} parent=5 // pred_region
      %s264 = ssub.s32 %s11, 1
      %s265 = sadd.s32 %s22, %s23
      %p266 = scmp.lt.s32.totalorder %s265, 0
      %s267 = scalar_select %p266, %s265, 0
      %p268 = scmp.lt.s32.totalorder %s21, 1
      %s269 = scalar_select %p268, %s21, 1
      %p270 = scmp.lt.s32.totalorder %s267, 0
      %s271 = scalar_select %p270, %s267, 0
      %s272 = smul.addr %s269, 4
      %s273 = sadd.s32 %s271, %s272
      %s274 = smul.addr %s273, 2
      %s275 = scalar_lea.vmem %s0, %s274
      %p276 = pneg %p64
      %p277 = pneg %p61
      %s278 = sadd.s32 %s22, %s23
      %p279 = scmp.lt.s32.totalorder %s278, 0
      %s280 = scalar_select %p279, %s278, 0
      %p281 = scmp.lt.s32.totalorder %s21, 1
      %s282 = scalar_select %p281, %s21, 1
      %p283 = scmp.lt.s32.totalorder %s280, 0
      %s284 = scalar_select %p283, %s280, 0
      %s285 = smul.addr %s282, 4
      %s286 = sadd.s32 %s284, %s285
      %s287 = smul.addr %s286, 2
      %s288 = scalar_lea.vmem %s1, %s287
      %p289 = pneg %p98
      %p290 = pneg %p95
      %s291 = sadd.s32 %s22, %s23
      %p292 = scmp.lt.s32.totalorder %s291, 0
      %s293 = scalar_select %p292, %s291, 0
      %p294 = scmp.lt.s32.totalorder %s21, 1
      %s295 = scalar_select %p294, %s21, 1
      %p296 = scmp.lt.s32.totalorder %s293, 0
      %s297 = scalar_select %p296, %s293, 0
      %s298 = smul.addr %s295, 2
      %s299 = sadd.s32 %s297, %s298
      %s300 = smul.addr %s299, 2
      %s301 = scalar_lea.vmem %s2, %s300
      %p302 = pneg %p132
      %p303 = pneg %p129
      %p304 = pneg %p160
      %p305 = pneg %p157
      %p306 = scmp.lt.s32.totalorder %s21, 1
      %s307 = scalar_select %p306, %s21, 1
      %p308 = scmp.lt.s32.totalorder %s22, 0
      %s309 = scalar_select %p308, %s22, 0
      %s310 = sadd.s32 %s309, %s307
      %s311 = scalar_lea.vmem %s3, %s310
      %p312 = pneg %p188
      %p313 = pneg %p185
      %p314 = scmp.lt.s32.totalorder %s21, 1
      %s315 = scalar_select %p314, %s21, 1
      %p316 = scmp.lt.s32.totalorder %s22, 0
      %s317 = scalar_select %p316, %s22, 0
      %s318 = sadd.s32 %s317, %s315
      %s319 = scalar_lea.vmem %s4, %s318
      %s320 = sadd.s32 %s22, %s23
      %p321 = scmp.lt.s32.totalorder %s320, 0
      %s322 = scalar_select %p321, %s320, 0
      %p323 = scmp.lt.s32.totalorder %s21, 1
      %s324 = scalar_select %p323, %s21, 1
      %p325 = scmp.lt.s32.totalorder %s322, 0
      %s326 = scalar_select %p325, %s322, 0
      %s327 = smul.addr %s324, 4
      %s328 = sadd.s32 %s326, %s327
      %s329 = smul.addr %s328, 2
      %s330 = scalar_lea.vmem %s0, %s329
      %s331 = sadd.s32 %s22, %s23
      %p332 = scmp.lt.s32.totalorder %s331, 0
      %s333 = scalar_select %p332, %s331, 0
      %s334 = sadd.s32 %s22, %s23
      %p335 = scmp.lt.s32.totalorder %s334, 0
      %s336 = scalar_select %p335, %s334, 0
      %p337 = scmp.lt.s32.totalorder %s21, 1
      %s338 = scalar_select %p337, %s21, 1
      %p339 = scmp.lt.s32.totalorder %s336, 0
      %s340 = scalar_select %p339, %s336, 0
      %s341 = smul.addr %s338, 4
      %s342 = sadd.s32 %s340, %s341
      %s343 = smul.addr %s342, 2
      %s344 = scalar_lea.vmem %s1, %s343
      %s345 = sadd.s32 %s22, %s23
      %p346 = scmp.lt.s32.totalorder %s345, 0
      %s347 = scalar_select %p346, %s345, 0
      %s348 = sadd.s32 %s22, %s23
      %p349 = scmp.lt.s32.totalorder %s348, 0
      %s350 = scalar_select %p349, %s348, 0
      %p351 = scmp.lt.s32.totalorder %s21, 1
      %s352 = scalar_select %p351, %s21, 1
      %p353 = scmp.lt.s32.totalorder %s350, 0
      %s354 = scalar_select %p353, %s350, 0
      %s355 = smul.addr %s352, 2
      %s356 = sadd.s32 %s354, %s355
      %s357 = smul.addr %s356, 2
      %s358 = scalar_lea.vmem %s2, %s357
      %s359 = sadd.s32 %s22, %s23
      %p360 = scmp.lt.s32.totalorder %s359, 0
      %s361 = scalar_select %p360, %s359, 0
      %p362 = scmp.lt.s32.totalorder %s21, 1
      %s363 = scalar_select %p362, %s21, 1
      %p364 = scmp.lt.s32.totalorder %s22, 0
      %s365 = scalar_select %p364, %s22, 0
      %s366 = sadd.s32 %s365, %s363
      %s367 = scalar_lea.vmem %s3, %s366
      %p368 = scmp.lt.s32.totalorder %s21, 1
      %s369 = scalar_select %p368, %s21, 1
      %p370 = scmp.lt.s32.totalorder %s22, 0
      %s371 = scalar_select %p370, %s22, 0
      %s372 = sadd.s32 %s371, %s369
      %s373 = scalar_lea.vmem %s4, %s372
      %p374 = scmp.eq.s32.totalorder %s23, 0
      // Predicated region
      $region33: #{c_cosine_similarity_loss.1} parent=31 // pred_check
        %p375 = pneg %p374
      $region34: #{c_cosine_similarity_loss.1} parent=31 // pred_check_branch
        %377 = sbr.rel (%p375) target = $region36
      $region35: #{c_cosine_similarity_loss.1} parent=31 // pred_region
        %378 = vst [vmem:[#allocation2] sm:$0x3] 0.0
        %379 = vst [vmem:[#allocation3] sm:$0x3] 0.0
      $region36: #{c_cosine_similarity_loss.1} parent=31 // pred_fallthru
        _
      %v380 = vld [vmem:[%s330] sm:$0x3]
      %v381 = vld [vmem:[%s344] sm:$0x3]
      %v382 = vmul.f32 %v380, %v381
      %v383 = vmul.f32 %v380, %v380
      %v384 = vmul.f32 %v381, %v381
      %s385 = scalar_lea.vmem %s330, 2
      %v386 = vld [vmem:[%s385] sm:$0x3]
      %s387 = scalar_lea.vmem %s344, 2
      %v388 = vld [vmem:[%s387] sm:$0x3]
      %v389 = vmul.f32 %v386, %v388
      %v390 = vadd.f32 %v382, %v389
      %v391 = vmul.f32 %v386, %v386
      %v392 = vadd.f32 %v383, %v391
      %v393 = vmul.f32 %v388, %v388
      %v394 = vadd.f32 %v384, %v393
      %s395 = scalar_lea.vmem %s330, 4
      %v396 = vld [vmem:[%s395] sm:$0x3]
      %s397 = scalar_lea.vmem %s344, 4
      %v398 = vld [vmem:[%s397] sm:$0x3]
      %v399 = vmul.f32 %v396, %v398
      %v400 = vadd.f32 %v390, %v399
      %v401 = vmul.f32 %v396, %v396
      %v402 = vadd.f32 %v392, %v401
      %v403 = vmul.f32 %v398, %v398
      %v404 = vadd.f32 %v394, %v403
      %s405 = scalar_lea.vmem %s330, 6
      %v406 = vld [vmem:[%s405] sm:$0x3]
      %s407 = scalar_lea.vmem %s344, 6
      %v408 = vld [vmem:[%s407] sm:$0x3]
      %v409 = vmul.f32 %v406, %v408
      %v410 = vadd.f32 %v400, %v409
      %v411 = vmul.f32 %v406, %v406
      %v412 = vadd.f32 %v402, %v411
      %v413 = vmul.f32 %v408, %v408
      %v414 = vadd.f32 %v404, %v413
      %v415 = vmax.f32 %v412, 1e-24
      %v416 = vrsqrt.pop %v415
      %v417 = vmul.f32 %v410, %v416
      %v418 = vmax.f32 %v414, 1e-24
      %v419 = vrsqrt.pop %v418
      %v420 = vmul.f32 %v417, %v419
      %v421 = vld [vmem:[%s358] sm:$0x3]
      %s422 = scalar_lea.vmem %s358, 2
      %v423 = vld [vmem:[%s422] sm:$0x3]
      %vm424 = vcmp.ge.f32.partialorder %v421, %v423
      %v425 = vsel %vm424, 0.0, %v420
      %v426 = vld [vmem:[#allocation2] sm:$0x3]
      %v427 = vadd.f32 %v426, %v420
      %428 = vst [vmem:[#allocation2] sm:$0x3] %v427
      %v429 = vld [vmem:[#allocation3] sm:$0x3]
      %v430 = vadd.f32 %v429, %v425
      %431 = vst [vmem:[#allocation3] sm:$0x3] %v430
      // Predicated region
      $region37: #{c_cosine_similarity_loss.1} parent=31 // pred_check
        %p432 = pneg %p374
      $region38: #{c_cosine_similarity_loss.1} parent=31 // pred_check_branch
        %434 = sbr.rel (%p432) target = $region40
      $region39: #{c_cosine_similarity_loss.1} parent=31 // pred_region
        %v435 = vld [vmem:[#allocation2] sm:$0x3]
        %vm436 = vcmask 1041408
        %v437 = vsel %vm436, %v435, 0.0
        %438 = vadd.xlane.f32.xlu0 %v437
        %v439 = vpop.xlane.xlu0 %438
        %v440 = vrot.slane %v439, 4
        %v441 = vadd.f32 %v439, %v440
        %v442 = vrot.slane %v441, 2
        %v443 = vadd.f32 %v441, %v442
        %v444 = vrot.slane %v443, 1
        %v445 = vadd.f32 %v443, %v444
        %s446 = vtos %v445
        %v447 = vstv %s446
        %vm448 = vcmask 0
        %449 = vst.msk [vmem:[%s367] sm:$0x1] %vm448, %v447
        %v450 = vld [vmem:[#allocation3] sm:$0x3]
        %v451 = vsel %vm436, %v450, 0.0
        %452 = vadd.xlane.f32.xlu0 %v451
        %v453 = vpop.xlane.xlu0 %452
        %v454 = vrot.slane %v453, 4
        %v455 = vadd.f32 %v453, %v454
        %v456 = vrot.slane %v455, 2
        %v457 = vadd.f32 %v455, %v456
        %v458 = vrot.slane %v457, 1
        %v459 = vadd.f32 %v457, %v458
        %s460 = vtos %v459
        %v461 = vstv %s460
        %462 = vst.msk [vmem:[%s373] sm:$0x1] %vm448, %v461
      $region40: #{c_cosine_similarity_loss.1} parent=31 // pred_fallthru
        _
      %p463 = scmp.lt.s32.totalorder %s21, 1
      %s464 = scalar_select %p463, %s21, 1
      %p465 = scmp.lt.s32.totalorder %s22, 0
      %s466 = scalar_select %p465, %s22, 0
      %s467 = sadd.s32 %s466, %s464
      %s468 = scalar_lea.vmem %s3, %s467
      %p469 = scmp.lt.s32.totalorder %s21, 1
      %s470 = scalar_select %p469, %s21, 1
      %p471 = scmp.lt.s32.totalorder %s22, 0
      %s472 = scalar_select %p471, %s22, 0
      %s473 = sadd.s32 %s472, %s470
      %s474 = scalar_lea.vmem %s4, %s473
      // Predicated region
      $region41: #{c_cosine_similarity_loss.1} parent=31 // pred_check
        %p475 = pneg %p157
      $region42: #{c_cosine_similarity_loss.1} parent=31 // pred_check_branch
        %477 = sbr.rel (%p475) target = $region44
      $region43: #{c_cosine_similarity_loss.1} parent=31 // pred_region
        _
      $region44: #{c_cosine_similarity_loss.1} parent=31 // pred_fallthru
        _
      // Predicated region
      $region45: #{c_cosine_similarity_loss.1} parent=31 // pred_check
        %p478 = pneg %p185
      $region46: #{c_cosine_similarity_loss.1} parent=31 // pred_check_branch
        %480 = sbr.rel (%p478) target = $region48
      $region47: #{c_cosine_similarity_loss.1} parent=31 // pred_region
        _
      $region48: #{c_cosine_similarity_loss.1} parent=31 // pred_fallthru
        _
    $region32: #{c_cosine_similarity_loss.1} parent=5 // pred_fallthru
      _
    %p481 = scmp.le.s32.totalorder 2, %s11
    // Predicated region
    $region49: #{c_cosine_similarity_loss.1} parent=5 // pred_check
      %p482 = pneg %p481
    $region50: #{c_cosine_similarity_loss.1} parent=5 // pred_check_branch
      %484 = sbr.rel (%p482) target = $region52
    $region51: #{c_cosine_similarity_loss.1} parent=5 // pred_region
      %s485 = ssub.s32 %s11, 2
      // Predicated region
      $region53: #{c_cosine_similarity_loss.1} parent=51 // pred_check
        %p486 = pneg %p163
      $region54: #{c_cosine_similarity_loss.1} parent=51 // pred_check_branch
        %488 = sbr.rel (%p486) target = $region56
      $region55: #{c_cosine_similarity_loss.1} parent=51 // pred_region
        %p489 = scmp.lt.s32.totalorder %s24, 1
        %s490 = scalar_select %p489, %s24, 1
        %p491 = scmp.lt.s32.totalorder %s25, 0
        %s492 = scalar_select %p491, %s25, 0
        %s493 = sadd.s32 %s492, %s490
        %s494 = scalar_lea.vmem %s3, %s493
      $region56: #{c_cosine_similarity_loss.1} parent=51 // pred_fallthru
        _
      // Predicated region
      $region57: #{c_cosine_similarity_loss.1} parent=51 // pred_check
        %p495 = pneg %p191
      $region58: #{c_cosine_similarity_loss.1} parent=51 // pred_check_branch
        %497 = sbr.rel (%p495) target = $region60
      $region59: #{c_cosine_similarity_loss.1} parent=51 // pred_region
        %p498 = scmp.lt.s32.totalorder %s24, 1
        %s499 = scalar_select %p498, %s24, 1
        %p500 = scmp.lt.s32.totalorder %s25, 0
        %s501 = scalar_select %p500, %s25, 0
        %s502 = sadd.s32 %s501, %s499
        %s503 = scalar_lea.vmem %s4, %s502
      $region60: #{c_cosine_similarity_loss.1} parent=51 // pred_fallthru
        _
    $region52: #{c_cosine_similarity_loss.1} parent=5 // pred_fallthru
      _
  $region6: #{c_cosine_similarity_loss.1} parent=0 // loop_footer
    %s15 = sadd.s32 1, %s11
  $region7: #{c_cosine_similarity_loss.1} parent=0 // loop_footer_branch
    %10 = sbr.rel target = $region3
  $region8: #{c_cosine_similarity_loss.1} parent=0 // loop_exit
    _

</llo_original>
